<compile_context>
chip_gen: v6e
topology: v6e:2x2x1
jax: 0.10.0
libtpu: 0.0.40
codegen_flags: <defaults>
</compile_context>

<pallas_src>
import functools

import jax
import jax.numpy as jnp
from jax.experimental import pallas as pl
from jax.experimental.pallas import tpu as pltpu


def _ce_partial_kernel(score_ref, label_ref, partial_ref,
                       *, n_rows, tile_n, tiles_per_split, num_tiles):
    """Accumulates sum_r (logsumexp(score[r]) - score[r, label[r]]) per split."""
    p = pl.program_id(0)                    # split index       ("parallel")
    i = pl.program_id(1)                    # tile within split ("arbitrary")
    tile_idx = p * tiles_per_split + i      # logical (unclamped) tile index

    @pl.when(i == 0)
    def _init():
        partial_ref[...] = jnp.zeros_like(partial_ref)

    # Native-dtype tile from HBM; math in f32 (important for bf16 inputs, and
    # v5e has no bf16 VPU path anyway).
    s = score_ref[...].astype(jnp.float32)                  # (tile_n, C)
    lab = label_ref[...]                                    # (tile_n, 1) int32

    # Numerically stable row-wise logsumexp.
    m = jnp.max(s, axis=-1, keepdims=True)                  # (tile_n, 1)
    lse = m + jnp.log(jnp.sum(jnp.exp(s - m), axis=-1, keepdims=True))

    # Logit at the label index via a lane-wise one-hot select + reduce.
    col = jax.lax.broadcasted_iota(jnp.int32, s.shape, 1)   # (tile_n, C)
    picked = jnp.sum(jnp.where(col == lab, s, 0.0), axis=-1, keepdims=True)

    per_row = lse - picked                                  # -log p(label)

    # Mask rows beyond the true batch size (ragged last tile, padded rows,
    # duplicated clamp tile).  Keep this a select (jnp.where), not a multiply:
    # out-of-bounds rows may hold Inf/NaN garbage.
    row = jax.lax.broadcasted_iota(jnp.int32, (tile_n, 1), 0)
    global_row = tile_idx * tile_n + row
    tile_sum = jnp.sum(jnp.where(global_row < n_rows, per_row, 0.0),
                       axis=0, keepdims=True)               # (1, 1)

    # Guard against the duplicated tile of an odd ceil-split (already fully
    # masked above; this is defensive and free).
    @pl.when(tile_idx < num_tiles)
    def _acc():
        # Broadcast-add into the whole lane-dense (8, 128) block; every
        # element of the block ends up holding this split's partial sum.
        partial_ref[...] += tile_sum


def _vmem_capacity_bytes():
    """Physical per-core VMEM (generation-aware), with a safe fallback."""
    try:
        cap = int(pltpu.get_tpu_info().vmem_capacity_bytes)
        if cap > 0:
            return cap
    except Exception:
        pass
    return 64 * 1024 * 1024      # v7x-sized conservative fallback


def _choose_tile_n(c, itemsize, budget_bytes):
    """Largest multiple-of-8 row tile whose conservative VMEM peak fits budget."""
    c_pad = -(-c // 128) * 128
    # Conservative per-row VMEM-peak estimate:
    #   2 x native-dtype score DMA buffers       : 2 * c_pad * itemsize
    #   ~6 full-tile f32/i32 intermediates       : 6 * c_pad * 4
    #     (f32 cast, col iota, exp/where temps, slack)
    #   ~10 lane-padded (tile_n, 1)-wide columns : 10 * 128 * 4
    #     (m, lse, picked, per_row, masks, 2 x lane-padded label DMA buffers)
    per_row = 2 * c_pad * itemsize + 6 * c_pad * 4 + 10 * 128 * 4
    tile = budget_bytes // per_row
    tile = (tile // 8) * 8
    return int(max(8, min(tile, 65536)))


def loss_forward(feat, score, label, a, *, _max_tile_rows=None):
    """JAX/Pallas equivalent of Loss.forward.

    feat  : unused (kept for signature parity with the PyTorch module)
    score : (N, C) logits (any float dtype; math is done in f32 in-kernel)
    label : (N,)   int class indices
    a     : scalar weight
    """
    del feat  # not used in the PyTorch forward
    n, c = score.shape
    itemsize = jnp.dtype(score.dtype).itemsize

    cap = _vmem_capacity_bytes()
    tile_budget = cap // 2               # ~32 MiB on v7x, ~64 MiB on v5e/v6e
    vmem_limit = int(cap * 3 // 4)       # scoped-VMEM limit: headroom over budget

    tile_n = _choose_tile_n(c, itemsize, tile_budget)
    if _max_tile_rows is not None:       # test hook: force the multi-tile path
        tile_n = max(8, min(tile_n, (_max_tile_rows // 8) * 8))
    # Keep both v7x TensorCores busy once there is enough work for two tiles.
    if n >= 1024:
        half = -(-n // 2)
        tile_n = min(tile_n, -(-half // 8) * 8)

    label_col = label.astype(jnp.int32).reshape(n, 1)

    if n <= tile_n:
        # Single-tile path: full-extent blocks.
        score_in, label_in, n_pad = score, label_col, n
        if n < 8:                        # keep at least 8 sublanes
            pad = 8 - n
            score_in = jnp.pad(score, ((0, pad), (0, 0)))
            label_in = jnp.pad(label_col, ((0, pad), (0, 0)))
            n_pad = 8
        tile_n = n_pad
        num_tiles = 1
    else:
        score_in, label_in = score, label_col
        num_tiles = -(-n // tile_n)      # ragged last tile is masked in-kernel

    # Always 2-way ceil-split when there is more than one tile (v7x megacore);
    # harmless extra outer step on single-core v5e/v6e.
    num_splits = 2 if num_tiles >= 2 else 1
    tiles_per_split = -(-num_tiles // num_splits)

    kernel = functools.partial(
        _ce_partial_kernel, n_rows=n, tile_n=tile_n,
        tiles_per_split=tiles_per_split, num_tiles=num_tiles)

    def tile_index(p, i):
        # Clamp so the duplicated last step of an odd ceil-split reads a real
        # tile; its contribution is masked + pl.when-guarded inside the kernel.
        return jnp.minimum(p * tiles_per_split + i, num_tiles - 1)

    cost = pl.CostEstimate(
        flops=int(5 * n * c),
        transcendentals=int(n * c + n),
        bytes_accessed=int(n * c * itemsize + n * 4 + num_splits * 8 * 128 * 4))

    partials = pl.pallas_call(
        kernel,
        out_shape=jax.ShapeDtypeStruct((num_splits * 8, 128), jnp.float32),
        grid_spec=pltpu.PrefetchScalarGridSpec(
            num_scalar_prefetch=0,
            grid=(num_splits, tiles_per_split),
            in_specs=[
                pl.BlockSpec((tile_n, c), lambda p, i: (tile_index(p, i), 0)),
                pl.BlockSpec((tile_n, 1), lambda p, i: (tile_index(p, i), 0)),
            ],
            out_specs=pl.BlockSpec((8, 128), lambda p, i: (p, 0)),
        ),
        compiler_params=pltpu.CompilerParams(
            dimension_semantics=("parallel", "arbitrary"),
            vmem_limit_bytes=vmem_limit),
        cost_estimate=cost,
    )(score_in, label_in)

    # Tiny scalar epilogue in plain JAX: one element per split holds that
    # split's partial sum (block is constant-filled), combine, mean, weight.
    l_cls = jnp.sum(partials[0::8, 0]) / jnp.float32(n)
    a32 = jnp.asarray(a, dtype=jnp.float32)
    total = (1.0 - a32) * l_cls
    return {'loss': {'total': total, 'class': l_cls}}


if __name__ == "__main__":
    key = jax.random.PRNGKey(0)
    k_feat, k_score, k_label = jax.random.split(key, 3)

    # Small shapes consistent with the module: batch=8 rows, 32 classes.
    N, C = 8, 32
    feat = jax.random.normal(k_feat, (N, 64), dtype=jnp.float32)   # unused
    score = jax.random.normal(k_score, (N, C), dtype=jnp.float32)
    label = jax.random.randint(k_label, (N,), 0, C, dtype=jnp.int32)
    a = 0.3

    out = loss_forward(feat, score, label, a)
    jax.block_until_ready(out)

    # Reference check (plain JAX cross-entropy, mean reduction).
    logp = jax.nn.log_softmax(score, axis=-1)
    ref_cls = -jnp.mean(logp[jnp.arange(N), label])
    ref_total = (1.0 - a) * ref_cls
    assert jnp.allclose(out['loss']['class'], ref_cls, atol=1e-5, rtol=1e-5)
    assert jnp.allclose(out['loss']['total'], ref_total, atol=1e-5, rtol=1e-5)

    # Also exercise the multi-tile / 2-way-split / ragged + odd-tile-count path
    # with a forced small row tile (still a small problem size).
    N2, C2 = 300, 32
    k_s2, k_l2 = jax.random.split(key)
    score2 = jax.random.normal(k_s2, (N2, C2), dtype=jnp.float32)
    label2 = jax.random.randint(k_l2, (N2,), 0, C2, dtype=jnp.int32)
    out2 = loss_forward(feat, score2, label2, a, _max_tile_rows=128)
    jax.block_until_ready(out2)
    logp2 = jax.nn.log_softmax(score2, axis=-1)
    ref2_cls = -jnp.mean(logp2[jnp.arange(N2), label2])
    assert jnp.allclose(out2['loss']['class'], ref2_cls, atol=1e-5, rtol=1e-5)
    assert jnp.allclose(out2['loss']['total'], (1.0 - a) * ref2_cls,
                        atol=1e-5, rtol=1e-5)

    print("KERNEL_OK")
</pallas_src>

<mosaic_0001>
module attributes {stable_mosaic.version = 11 : i64} {
  func.func @_ce_partial_kernel(%arg0: i32, %arg1: i32, %arg2: memref<8x32xf32, #tpu.memory_space<vmem>>, %arg3: memref<8x1xi32, #tpu.memory_space<vmem>>, %arg4: memref<8x128xf32, #tpu.memory_space<vmem>>) attributes {dimension_semantics = [#tpu.dimension_semantics<parallel>, #tpu.dimension_semantics<arbitrary>], iteration_bounds = array<i64: 1, 1>, scalar_prefetch = 0 : i64, scratch_operands = 0 : i64, tpu.core_type = #tpu.core_type<tc>, window_params = [{transform_indices = @transform_0, window_bounds = array<i64: 8, 32>}, {transform_indices = @transform_1, window_bounds = array<i64: 8, 1>}, {transform_indices = @transform_2, window_bounds = array<i64: 8, 128>}]} {
    %c1_i32 = arith.constant 1 : i32
    %0 = arith.muli %arg0, %c1_i32 : i32
    %1 = arith.addi %0, %arg1 : i32
    %c0_i32 = arith.constant 0 : i32
    %2 = arith.cmpi eq, %arg1, %c0_i32 : i32
    %3 = arith.extui %2 : i1 to i32
    %c0_i32_0 = arith.constant 0 : i32
    %4 = arith.cmpi ne, %3, %c0_i32_0 : i32
    scf.if %4 {
      %cst_12 = arith.constant 0.000000e+00 : f32
      %37 = vector.broadcast %cst_12 : f32 to vector<8x128xf32>
      %c0_13 = arith.constant 0 : index
      %c0_14 = arith.constant 0 : index
      %38 = vector.load %arg4[%c0_13, %c0_14] : memref<8x128xf32, #tpu.memory_space<vmem>>, vector<8x128xf32>
      tpu.vector_store %arg4[%c0_13, %c0_14], %37 {strides = array<i32>} : memref<8x128xf32, #tpu.memory_space<vmem>>, vector<8x128xf32>,
    } else {
    }
    %c0 = arith.constant 0 : index
    %c0_1 = arith.constant 0 : index
    %5 = vector.load %arg2[%c0, %c0_1] : memref<8x32xf32, #tpu.memory_space<vmem>>, vector<8x32xf32>
    %c0_2 = arith.constant 0 : index
    %c0_3 = arith.constant 0 : index
    %6 = vector.load %arg3[%c0_2, %c0_3] : memref<8x1xi32, #tpu.memory_space<vmem>>, vector<8x1xi32>
    %cst = arith.constant dense<0xFF800000> : vector<8xf32>
    %7 = vector.multi_reduction <maximumf>, %5, %cst [1] : vector<8x32xf32> to vector<8xf32>
    %8 = vector.shape_cast %7 : vector<8xf32> to vector<8x1xf32>
    %9 = vector.broadcast %8 : vector<8x1xf32> to vector<8x32xf32>
    %10 = arith.subf %5, %9 : vector<8x32xf32>
    %11 = math.exp %10 : vector<8x32xf32>
    %cst_4 = arith.constant dense<0.000000e+00> : vector<8xf32>
    %12 = vector.multi_reduction <add>, %11, %cst_4 [1] : vector<8x32xf32> to vector<8xf32>
    %13 = vector.shape_cast %12 : vector<8xf32> to vector<8x1xf32>
    %14 = math.log %13 : vector<8x1xf32>
    %15 = arith.addf %8, %14 : vector<8x1xf32>
    %16 = tpu.iota {dimensions = array<i32: 1>} : vector<8x32xi32>
    %17 = vector.broadcast %6 : vector<8x1xi32> to vector<8x32xi32>
    %18 = arith.cmpi eq, %16, %17 : vector<8x32xi32>
    %cst_5 = arith.constant 0.000000e+00 : f32
    %19 = vector.broadcast %cst_5 : f32 to vector<8x32xf32>
    %20 = arith.select %18, %5, %19 : vector<8x32xi1>, vector<8x32xf32>
    %cst_6 = arith.constant dense<0.000000e+00> : vector<8xf32>
    %21 = vector.multi_reduction <add>, %20, %cst_6 [1] : vector<8x32xf32> to vector<8xf32>
    %22 = vector.shape_cast %21 : vector<8xf32> to vector<8x1xf32>
    %23 = arith.subf %15, %22 : vector<8x1xf32>
    %24 = tpu.iota {dimensions = array<i32: 0>} : vector<8x1xi32>
    %c8_i32 = arith.constant 8 : i32
    %25 = arith.muli %1, %c8_i32 : i32
    %26 = vector.broadcast %25 : i32 to vector<8x1xi32>
    %27 = arith.addi %26, %24 : vector<8x1xi32>
    %c8_i32_7 = arith.constant 8 : i32
    %28 = vector.broadcast %c8_i32_7 : i32 to vector<8x1xi32>
    %29 = arith.cmpi slt, %27, %28 : vector<8x1xi32>
    %cst_8 = arith.constant 0.000000e+00 : f32
    %30 = vector.broadcast %cst_8 : f32 to vector<8x1xf32>
    %31 = arith.select %29, %23, %30 : vector<8x1xi1>, vector<8x1xf32>
    %cst_9 = arith.constant dense<0.000000e+00> : vector<1xf32>
    %32 = vector.multi_reduction <add>, %31, %cst_9 [0] : vector<8x1xf32> to vector<1xf32>
    %33 = vector.shape_cast %32 : vector<1xf32> to vector<1x1xf32>
    %c1_i32_10 = arith.constant 1 : i32
    %34 = arith.cmpi slt, %1, %c1_i32_10 : i32
    %35 = arith.extui %34 : i1 to i32
    %c0_i32_11 = arith.constant 0 : i32
    %36 = arith.cmpi ne, %35, %c0_i32_11 : i32
    scf.if %36 {
      %c0_12 = arith.constant 0 : index
      %c0_13 = arith.constant 0 : index
      %37 = vector.load %arg4[%c0_12, %c0_13] : memref<8x128xf32, #tpu.memory_space<vmem>>, vector<8x128xf32>
      %38 = vector.broadcast %33 : vector<1x1xf32> to vector<8x128xf32>
      %39 = arith.addf %37, %38 : vector<8x128xf32>
      %c0_14 = arith.constant 0 : index
      %c0_15 = arith.constant 0 : index
      %40 = vector.load %arg4[%c0_14, %c0_15] : memref<8x128xf32, #tpu.memory_space<vmem>>, vector<8x128xf32>
      tpu.vector_store %arg4[%c0_14, %c0_15], %39 {strides = array<i32>} : memref<8x128xf32, #tpu.memory_space<vmem>>, vector<8x128xf32>,
    } else {
    }
    return
  }
  func.func @transform_0(%arg0: i32, %arg1: i32) -> (i32, i32) {
    %c1_i32 = arith.constant 1 : i32
    %0 = arith.muli %arg0, %c1_i32 : i32
    %1 = arith.addi %0, %arg1 : i32
    %c0_i32 = arith.constant 0 : i32
    %2 = arith.minsi %1, %c0_i32 : i32
    %c0_i32_0 = arith.constant 0 : i32
    %c0_i32_1 = arith.constant 0 : i32
    return %2, %c0_i32_0 : i32, i32
  }
  func.func @transform_1(%arg0: i32, %arg1: i32) -> (i32, i32) {
    %c1_i32 = arith.constant 1 : i32
    %0 = arith.muli %arg0, %c1_i32 : i32
    %1 = arith.addi %0, %arg1 : i32
    %c0_i32 = arith.constant 0 : i32
    %2 = arith.minsi %1, %c0_i32 : i32
    %c0_i32_0 = arith.constant 0 : i32
    %c0_i32_1 = arith.constant 0 : i32
    return %2, %c0_i32_0 : i32, i32
  }
  func.func @transform_2(%arg0: i32, %arg1: i32) -> (i32, i32) {
    %c0_i32 = arith.constant 0 : i32
    %c0_i32_0 = arith.constant 0 : i32
    return %arg0, %c0_i32 : i32, i32
  }
}

</mosaic_0001>

<llo_original>
// kernel: tpu_custom_call.1
$region0: #{tpu_custom_call.1}
  #allocation0 [shape = 'u32[]', space=smem, size = 0x4, offset = 0x4, fixed_abs, tag = 'smem constant byte address 0x4 - core index']
  #allocation1 [shape = 'u32[144,128]{1,0:T(1,128)}', space=vmem, size = 0x12000, scoped, tag = 'internal scratch']
  %s0 = inlined_call_operand.vmem [shape: f32[8,32], index: 0, kind: input, shape index: {}]
  %s1 = inlined_call_operand.vmem [shape: s32[8,1], index: 1, kind: input, shape index: {}]
  %s2 = inlined_call_operand.hbm [shape: f32[8,128], index: 2, kind: output, shape index: {}]
  %s3 = sld [smem:[#allocation0]]
  $region26: #{tpu_custom_call.1} parent=0
    _
  %s5 = ssub.s32 1, %s3
  %s6 = scalar_select 0, %s5, %s3
  $region1: #{tpu_custom_call.1} parent=0
    #allocation2 [shape = 'u8[4096]{0}', space=vmem, size = 0x1000, scoped, tag = 'output window, operand 0, single buffered']
    #allocation3 [shape = 's32[1]{0}', space=sflag, size = 0x4, scoped, tag = 'scoped memory for tpu_custom_call.1']
    %7 = vsyncpa [#allocation3], 0
    // Predicated region
    $region2: #{tpu_custom_call.1} parent=1 // pred_check
      _
    $region3: #{tpu_custom_call.1} parent=1 // pred_check_branch
      %9 = sbr.rel (0) target = $region5
    $region4: #{tpu_custom_call.1} parent=1 // pred_region
      %s10 = sadd.s32 0, 0
      %p11 = scmp.lt.s32.totalorder %s10, 0
      %s12 = scalar_select %p11, %s10, 0
      %p13 = scmp.lt.s32.totalorder %s12, 0
      %s14 = scalar_select %p13, %s12, 0
      %s15 = smul.addr %s14, 8
      %s16 = scalar_lea.vmem %s0, %s15
      %s17 = sadd.s32 0, 0
      %p18 = scmp.lt.s32.totalorder %s17, 0
      %s19 = scalar_select %p18, %s17, 0
    $region5: #{tpu_custom_call.1} parent=1 // pred_fallthru
      _
    // Predicated region
    $region6: #{tpu_custom_call.1} parent=1 // pred_check
      _
    $region7: #{tpu_custom_call.1} parent=1 // pred_check_branch
      %21 = sbr.rel (0) target = $region9
    $region8: #{tpu_custom_call.1} parent=1 // pred_region
      %s22 = sadd.s32 0, 0
      %p23 = scmp.lt.s32.totalorder %s22, 0
      %s24 = scalar_select %p23, %s22, 0
      %p25 = scmp.lt.s32.totalorder %s24, 0
      %s26 = scalar_select %p25, %s24, 0
      %s27 = smul.addr %s26, 8
      %s28 = scalar_lea.vmem %s1, %s27
      %s29 = sadd.s32 0, 0
      %p30 = scmp.lt.s32.totalorder %s29, 0
      %s31 = scalar_select %p30, %s29, 0
    $region9: #{tpu_custom_call.1} parent=1 // pred_fallthru
      _
    %s32 = sadd.s32 0, 0
    %p33 = scmp.lt.s32.totalorder %s32, 0
    %s34 = scalar_select %p33, %s32, 0
    %p35 = scmp.lt.s32.totalorder %s34, 0
    %s36 = scalar_select %p35, %s34, 0
    %s37 = smul.addr %s36, 8
    %s38 = scalar_lea.vmem %s0, %s37
    %s39 = sadd.s32 0, 0
    %p40 = scmp.lt.s32.totalorder %s39, 0
    %s41 = scalar_select %p40, %s39, 0
    %p42 = scmp.lt.s32.totalorder %s41, 0
    %s43 = scalar_select %p42, %s41, 0
    %s44 = smul.addr %s43, 8
    %s45 = scalar_lea.vmem %s1, %s44
    %s46 = sadd.s32 0, 0
    %p47 = scmp.lt.s32.totalorder %s46, 0
    %s48 = scalar_select %p47, %s46, 0
    %p49 = scmp.lt.s32.totalorder %s48, 0
    %s50 = scalar_select %p49, %s48, 0
    %s51 = smul.addr %s50, 8
    %s52 = scalar_lea.vmem %s0, %s51
    %s53 = sadd.s32 0, 0
    %p54 = scmp.lt.s32.totalorder %s53, 0
    %s55 = scalar_select %p54, %s53, 0
    %s56 = sadd.s32 0, 0
    %p57 = scmp.lt.s32.totalorder %s56, 0
    %s58 = scalar_select %p57, %s56, 0
    %p59 = scmp.lt.s32.totalorder %s58, 0
    %s60 = scalar_select %p59, %s58, 0
    %s61 = smul.addr %s60, 8
    %s62 = scalar_lea.vmem %s1, %s61
    %s63 = sadd.s32 0, 0
    %p64 = scmp.lt.s32.totalorder %s63, 0
    %s65 = scalar_select %p64, %s63, 0
    %s66 = sadd.s32 0, 0
    %p67 = scmp.eq.s32.totalorder 0, 0
    // Predicated region
    $region10: #{tpu_custom_call.1} parent=1 // pred_check
      %p68 = pneg %p67
    $region11: #{tpu_custom_call.1} parent=1 // pred_check_branch
      %70 = sbr.rel (%p68) target = $region13
    $region12: #{tpu_custom_call.1} parent=1 // pred_region
      %71 = vst [vmem:[#allocation2] sm:$0xff] 0.0
    $region13: #{tpu_custom_call.1} parent=1 // pred_fallthru
      _
    %v72 = vld [vmem:[%s52] sm:$0xff]
    %v73 = vld [vmem:[%s62] sm:$0xff]
    %vm74 = vcmask 261120
    %v75 = vsel %vm74, %v72, -inf
    %76 = vmax.xlane.f32.xlu0 %v75
    %v77 = vpop.xlane.xlu0 %76
    %v78 = vsub.f32 %v72, %v77
    %v79 = vmul.f32 %v78, 1.442695
    %v80 = vpow.pop %v79
    %v81 = vsel %vm74, %v80, 0.0
    %82 = vadd.xlane.f32.xlu0 %v81
    %v83 = vpop.xlane.xlu0 %82
    %v84 = vlog2.pop %v83
    %v85 = vmul.f32 %v84, 0.6931472
    %v86 = vadd.f32 %v77, %v85
    %v87 = vlaneseq
    %v88 = vand.u32 %v87, 127
    %89 = vset.pattern.permute.xlu0 0
    %90 = vperm.xlu0 %89, %v73
    %v91 = vpop.permute.xlu0 %90
    %vm92 = vcmp.eq.s32.totalorder %v88, %v91
    %v93 = vsel %vm92, %v72, 0.0
    %v94 = vsel %vm74, %v93, 0.0
    %95 = vadd.xlane.f32.xlu0 %v94
    %v96 = vpop.xlane.xlu0 %95
    %v97 = vsub.f32 %v86, %v96
    %v98 = vlaneseq
    %v99 = vshrl.u32 %v98, 7
    %s100 = smul.u32 %s66, 8
    %v101 = vstv %s100
    %v102 = vadd.s32 %v101, %v99
    %vm103 = vcmp.lt.s32.totalorder %v102, 8
    %v104 = vsel %vm103, %v97, 0.0
    %v105 = vrot.slane %v104, 4
    %v106 = vadd.f32 %v104, %v105
    %v107 = vrot.slane %v106, 2
    %v108 = vadd.f32 %v106, %v107
    %v109 = vrot.slane %v108, 1
    %v110 = vadd.f32 %v108, %v109
    %p111 = scmp.lt.s32.totalorder %s66, 1
    // Predicated region
    $region14: #{tpu_custom_call.1} parent=1 // pred_check
      %p112 = pneg %p111
    $region15: #{tpu_custom_call.1} parent=1 // pred_check_branch
      %114 = sbr.rel (%p112) target = $region17
    $region16: #{tpu_custom_call.1} parent=1 // pred_region
      %v115 = vld [vmem:[#allocation2] sm:$0xff]
      %v116 = vadd.f32 %v115, %v110
      %117 = vst [vmem:[#allocation2] sm:$0xff] %v116
    $region17: #{tpu_custom_call.1} parent=1 // pred_fallthru
      _
    // Predicated region
    $region18: #{tpu_custom_call.1} parent=1 // pred_check
      _
    $region19: #{tpu_custom_call.1} parent=1 // pred_check_branch
      %119 = sbr.rel (0) target = $region21
    $region20: #{tpu_custom_call.1} parent=1 // pred_region
      %s121 = ssub.s32 128, 128
      %122 = vsyncadd [#allocation3], %s121
      %s124 = sshll.u32 [#allocation2], 4
      %s125 = int_to_ptr.vmem [resolvable:$true] %s124
      %127 = dma.vmem_to_hbm [thread:$0]  %s125, 128, %s2, [#allocation3]
    $region21: #{tpu_custom_call.1} parent=1 // pred_fallthru
      _
    // Predicated region
    $region22: #{tpu_custom_call.1} parent=1 // pred_check
      _
    $region23: #{tpu_custom_call.1} parent=1 // pred_check_branch
      %129 = sbr.rel (0) target = $region25
    $region24: #{tpu_custom_call.1} parent=1 // pred_region
      %130 = dma.done [#allocation3], 128
    $region25: #{tpu_custom_call.1} parent=1 // pred_fallthru
      _
    %131 = vsyncpa [#allocation3], 1

</llo_original>
